<compile_context>
chip_gen: v6e
topology: v6e:2x2x1
jax: 0.10.0
libtpu: 0.0.40
codegen_flags: <defaults>
</compile_context>

<pallas_src>
import functools

import jax
import jax.numpy as jnp
from jax.experimental import pallas as pl
from jax.experimental.pallas import tpu as pltpu

_MiB = 1024 * 1024
_SUBLANE_PACK = {4: 8, 2: 16, 1: 32}   # itemsize -> rows per vreg (sublane pack height)


def _tpu_caps():
    """(per-core VMEM bytes, TensorCores per chip) — best effort, conservative defaults."""
    vmem = 64 * _MiB                    # conservative default = v7x per-TC VMEM
    cores = 1
    try:
        info = pltpu.get_tpu_info()
        vmem = int(getattr(info, "vmem_capacity_bytes", vmem)) or vmem
        for attr in ("num_cores", "core_count", "num_tensorcores", "tensorcores_per_chip"):
            val = getattr(info, attr, None)
            if val:
                cores = int(val)
                break
        else:
            # Heuristic: v7x exposes 64 MiB per TC and has 2 TCs; v5e/v6e: 128 MiB, 1 TC.
            cores = 2 if vmem <= 64 * _MiB else 1
    except Exception:
        pass
    return vmem, cores


def _vmem_limit_bytes(vmem_cap):
    """Physical VMEM minus headroom for Mosaic internals (96 MiB on v5e/v6e, ~48 MiB on v7x)."""
    headroom = 16 * _MiB if vmem_cap <= 64 * _MiB else 32 * _MiB
    return max(vmem_cap - headroom, vmem_cap // 2, 16 * _MiB)


def _min_value(dtype):
    dtype = jnp.dtype(dtype)
    if jnp.issubdtype(dtype, jnp.floating):
        return jnp.array(-jnp.inf, dtype)
    return jnp.array(jnp.iinfo(dtype).min, dtype)


def _block_spec(shape, index_map, buffers=2):
    """BlockSpec with an optional deeper input pipeline (guarded: older jax falls back)."""
    if buffers > 2:
        try:
            return pl.BlockSpec(shape, index_map, pipeline_mode=pl.Buffered(buffers))
        except Exception:
            pass
    return pl.BlockSpec(shape, index_map)


def _partial_step(x_ref, acc_ref, *, mode, n, n_total, tn, acc_rows, mask_partial):
    """One streaming-reduce step over a (Bt, Tn, Td) x tile.

    Collapses the Tn axis only down to `acc_rows` (the vreg sublane pack height)
    with VPU elementwise max/add across vregs; the single cross-sublane (XLU)
    reduce is deferred to the finalize step.
    """
    xt = x_ref[...]
    if mode == "mean":
        xt = xt.astype(jnp.float32)                 # sum in f32 (bf16-safe)
    fill = _min_value(xt.dtype) if mode == "max" else jnp.zeros((), xt.dtype)
    if mask_partial:
        row = n * tn + jax.lax.broadcasted_iota(jnp.int32, xt.shape, 1)
        xt = jnp.where(row < n_total, xt, fill)
    bt, rows, d = xt.shape
    red = jnp.max if mode == "max" else jnp.sum
    if acc_rows > 1 and rows > acc_rows:
        # Split the sublane axis at vreg-tile boundaries: reducing over axis 1 is
        # vreg-to-vreg elementwise work (VPU), no cross-sublane shuffles per step.
        part = red(xt.reshape(bt, rows // acc_rows, acc_rows, d), axis=1)
    elif acc_rows > 1:                              # rows == acc_rows
        part = xt
    else:
        part = red(xt, axis=1, keepdims=True)
    part = part.astype(acc_ref.dtype)

    @pl.when(n == 0)
    def _init():
        acc_ref[...] = part

    @pl.when(n > 0)
    def _update():
        if mode == "max":
            acc_ref[...] = jnp.maximum(acc_ref[...], part)
        else:
            acc_ref[...] = acc_ref[...] + part


def _pooled_value(acc_ref, *, mode, n_total, acc_rows):
    """Final cross-sublane reduce of the accumulator (done once) + mean scaling."""
    acc = acc_ref[...]
    if acc_rows > 1:
        pooled = (jnp.max if mode == "max" else jnp.sum)(acc, axis=1, keepdims=True)
    else:
        pooled = acc
    if mode == "mean":
        pooled = pooled * (1.0 / float(n_total))
    return pooled


def _make_fused_kernel(mode, n_total, tn, acc_rows):
    """Fused path: writes manager tokens + broadcast pooled features into one slab."""
    mask_partial = (n_total % tn) != 0

    def kernel(mi_ref, x_ref, o_ref, acc_ref):
        n = pl.program_id(1)
        _partial_step(x_ref, acc_ref, mode=mode, n=n, n_total=n_total, tn=tn,
                      acc_rows=acc_rows, mask_partial=mask_partial)

        @pl.when(n == pl.num_programs(1) - 1)
        def _finalize():
            pooled = _pooled_value(acc_ref, mode=mode, n_total=n_total, acc_rows=acc_rows)
            bt, m, dm = mi_ref.shape
            d = x_ref.shape[-1]
            # Two lane-aligned slab stores (Dm % 128 == 0 on this path): no concat relayout.
            o_ref[:, :, :dm] = mi_ref[...].astype(o_ref.dtype)
            o_ref[:, :, dm:] = jnp.broadcast_to(pooled, (bt, m, d)).astype(o_ref.dtype)

    return kernel


def _make_pooled_kernel(mode, n_total, tn, acc_rows):
    """Pooled-only path: emits the (Bt, 1, Td) pooled vector; concat happens in XLA."""
    mask_partial = (n_total % tn) != 0

    def kernel(x_ref, o_ref, acc_ref):
        n = pl.program_id(2)
        _partial_step(x_ref, acc_ref, mode=mode, n=n, n_total=n_total, tn=tn,
                      acc_rows=acc_rows, mask_partial=mask_partial)

        @pl.when(n == pl.num_programs(2) - 1)
        def _finalize():
            o_ref[...] = _pooled_value(
                acc_ref, mode=mode, n_total=n_total, acc_rows=acc_rows
            ).astype(o_ref.dtype)

    return kernel


@functools.partial(jax.jit, static_argnames=("manager_conditioning", "_force_tiles"))
def manager_conditioner(x, manager_input, *, manager_conditioning, _force_tiles=None):
    """Pallas implementation of ManagerConditioner.forward.

    x:             (B, N, D)  point features
    manager_input: (B, M, Dm) manager tokens
    returns:       (B, M, Dm + D) for 'max'/'mean'/'cat', else manager_input unchanged.
    `_force_tiles=(Bt, Tn)` is a test-only override of the tile heuristics.
    """
    if manager_conditioning not in ("max", "mean", "cat"):
        return manager_input                        # point_rep is None -> identity

    if manager_conditioning == "cat":
        # Zero-compute, pure data movement: XLA's fused concat is bandwidth-optimal.
        assert x.shape[1] == manager_input.shape[1], (
            "'cat' mode requires x and manager_input to share the sequence length")
        return jnp.concatenate([manager_input, x], axis=-1)

    mode = manager_conditioning
    B, N, D = x.shape
    Bm, M, Dm = manager_input.shape
    assert B == Bm
    out_dtype = jnp.result_type(manager_input.dtype, x.dtype)

    x_isz = jnp.dtype(x.dtype).itemsize
    mi_isz = jnp.dtype(manager_input.dtype).itemsize
    out_isz = jnp.dtype(out_dtype).itemsize
    pack = _SUBLANE_PACK.get(x_isz, 8)
    acc_dtype = x.dtype if mode == "max" else jnp.float32   # max is exact in-dtype
    acc_isz = jnp.dtype(acc_dtype).itemsize

    vmem_cap, num_cores = _tpu_caps()
    vmem_limit = _vmem_limit_bytes(vmem_cap)
    budget = int(vmem_limit * 0.75)

    fused = (Dm % 128 == 0)   # lane-aligned manager width -> single fused output slab

    def step_cost(bt, tn, nbuf_x, td):
        """VMEM working set of one grid step (multi-buffered blocks + padded scratch)."""
        c = nbuf_x * bt * tn * td * x_isz                    # x blocks
        c += bt * max(pack, 8) * td * acc_isz                # accumulator (sublane-padded)
        if fused:
            c += 2 * bt * M * Dm * mi_isz                    # manager blocks
            c += 2 * bt * M * (Dm + D) * out_isz             # output slab blocks
        else:
            c += 2 * bt * 8 * td * out_isz                   # pooled output blocks (padded)
        return c

    n_buffers = 2
    if _force_tiles is not None:
        Bt, Tn = _force_tiles
        Bt, Tn = int(min(Bt, B)), int(min(Tn, N))
    else:
        per_b = step_cost(1, N, 2, D)
        bt_fit = max(1, budget // max(1, per_b))
        bt_cap = max(1, (8 * _MiB) // max(1, N * D * x_isz))   # >8 MiB x tiles add no BW
        bt_cores = max(1, pl.cdiv(B, num_cores)) if num_cores > 1 else B
        Bt = int(max(1, min(B, bt_fit, bt_cap, bt_cores)))

        Tn = N
        if Bt == 1 and per_b > budget:
            # Tile the point axis; the partial last tile is masked in-kernel, so Tn
            # does NOT have to divide N. Deepen the x pipeline to hide DMA latency.
            n_buffers = 3
            fixed = step_cost(1, 0, n_buffers, D)
            max_rows = max(pack, (budget - fixed) // max(1, n_buffers * D * x_isz))
            Tn = int(max(pack, (max_rows // pack) * pack))
            if Tn >= N:
                Tn, n_buffers = N, 2

    b_steps = pl.cdiv(B, Bt)
    n_steps = pl.cdiv(N, Tn)

    # Give the second TensorCore (v7x) work when the batch axis alone cannot:
    # switch to the pooled-only path and split the feature axis across cores.
    Td, d_steps = D, 1
    if (num_cores > 1 and b_steps < num_cores
            and D % 128 == 0 and D >= 128 * num_cores):
        fused = False
        Td = 128 * max(1, D // (128 * num_cores))
        d_steps = pl.cdiv(D, Td)

    acc_rows = pack if (Tn % pack == 0 and Tn >= pack) else 1

    if fused:
        kernel = _make_fused_kernel(mode, N, Tn, acc_rows)
        return pl.pallas_call(
            kernel,
            out_shape=jax.ShapeDtypeStruct((B, M, Dm + D), out_dtype),
            grid_spec=pltpu.PrefetchScalarGridSpec(
                num_scalar_prefetch=0,
                grid=(b_steps, n_steps),
                in_specs=[
                    pl.BlockSpec((Bt, M, Dm), lambda b, n: (b, 0, 0)),           # manager
                    _block_spec((Bt, Tn, D), lambda b, n: (b, n, 0), n_buffers),  # x
                ],
                out_specs=pl.BlockSpec((Bt, M, Dm + D), lambda b, n: (b, 0, 0)),
                scratch_shapes=[pltpu.VMEM((Bt, acc_rows, D), acc_dtype)],
            ),
            compiler_params=pltpu.CompilerParams(
                dimension_semantics=("parallel", "arbitrary"),
                vmem_limit_bytes=int(vmem_limit),
            ),
        )(manager_input, x)

    # Pooled-only path: kernel emits (B, 1, D); XLA broadcasts + concatenates.
    kernel = _make_pooled_kernel(mode, N, Tn, acc_rows)
    pooled = pl.pallas_call(
        kernel,
        out_shape=jax.ShapeDtypeStruct((B, 1, D), out_dtype),
        grid_spec=pltpu.PrefetchScalarGridSpec(
            num_scalar_prefetch=0,
            grid=(b_steps, d_steps, n_steps),
            in_specs=[_block_spec((Bt, Tn, Td), lambda b, d, n: (b, n, d), n_buffers)],
            out_specs=pl.BlockSpec((Bt, 1, Td), lambda b, d, n: (b, 0, d)),
            scratch_shapes=[pltpu.VMEM((Bt, acc_rows, Td), acc_dtype)],
        ),
        compiler_params=pltpu.CompilerParams(
            dimension_semantics=("parallel", "parallel", "arbitrary"),
            vmem_limit_bytes=int(vmem_limit),
        ),
    )(x)
    rep = jnp.broadcast_to(pooled, (B, M, D))
    return jnp.concatenate([manager_input.astype(out_dtype), rep], axis=-1)


def _reference(x, manager_input, mode):
    if mode == "max":
        pooled = jnp.max(x.astype(jnp.float32), axis=1, keepdims=True)
    elif mode == "mean":
        pooled = jnp.mean(x.astype(jnp.float32), axis=1, keepdims=True)
    elif mode == "cat":
        return jnp.concatenate([manager_input, x], axis=-1)
    else:
        return manager_input
    out_dtype = jnp.result_type(manager_input.dtype, x.dtype)
    rep = jnp.broadcast_to(pooled, (x.shape[0], manager_input.shape[1], x.shape[2]))
    return jnp.concatenate(
        [manager_input.astype(out_dtype), rep.astype(out_dtype)], axis=-1)


if __name__ == "__main__":
    key = jax.random.PRNGKey(0)
    k1, k2, k3, k4, k5 = jax.random.split(key, 5)
    ok = True

    # 1) Lane-dense shapes (Dm % 128 == 0) -> fused output-slab kernel, unmasked stores.
    B, N, M, D, Dm = 2, 32, 8, 128, 128
    x = jax.random.normal(k1, (B, N, D), dtype=jnp.float32)
    mi = jax.random.normal(k2, (B, M, Dm), dtype=jnp.float32)
    for mode in ("max", "mean"):
        out = jax.block_until_ready(manager_conditioner(x, mi, manager_conditioning=mode))
        ref = _reference(x, mi, mode)
        ok &= out.shape == (B, M, Dm + D)
        ok &= bool(jnp.allclose(out, ref, atol=1e-5, rtol=1e-5))

    # 2) Lane-sparse manager width (Dm = 32) -> pooled-only kernel + XLA concat.
    B2, N2, M2, D2, Dm2 = 2, 16, 8, 32, 32
    xs = jax.random.normal(k3, (B2, N2, D2), dtype=jnp.float32)
    mis = jax.random.normal(k4, (B2, M2, Dm2), dtype=jnp.float32)
    for mode in ("max", "mean"):
        out = jax.block_until_ready(manager_conditioner(xs, mis, manager_conditioning=mode))
        ref = _reference(xs, mis, mode)
        ok &= out.shape == (B2, M2, Dm2 + D2)
        ok &= bool(jnp.allclose(out, ref, atol=1e-5, rtol=1e-5))

    # 3) Multi-step N reduction with a masked partial last tile (forced tiling), fused path.
    B3, N3, M3, D3, Dm3 = 2, 20, 4, 128, 128
    x3 = jax.random.normal(k5, (B3, N3, D3), dtype=jnp.float32)
    mi3 = jax.random.normal(k2, (B3, M3, Dm3), dtype=jnp.float32)
    for mode in ("max", "mean"):
        out = jax.block_until_ready(
            manager_conditioner(x3, mi3, manager_conditioning=mode, _force_tiles=(1, 8)))
        ref = _reference(x3, mi3, mode)
        ok &= bool(jnp.allclose(out, ref, atol=1e-5, rtol=1e-5))

    # 4) Multi-step masked reduction, pooled-only path (Dm not 128-aligned).
    x4 = jax.random.normal(k5, (2, 20, 32), dtype=jnp.float32)
    mi4 = jax.random.normal(k4, (2, 4, 32), dtype=jnp.float32)
    for mode in ("max", "mean"):
        out = jax.block_until_ready(
            manager_conditioner(x4, mi4, manager_conditioning=mode, _force_tiles=(1, 8)))
        ref = _reference(x4, mi4, mode)
        ok &= bool(jnp.allclose(out, ref, atol=1e-5, rtol=1e-5))

    # 5) bf16 'max' — accumulated exactly in bf16 (no f32 upcast).
    xb, mib = x.astype(jnp.bfloat16), mi.astype(jnp.bfloat16)
    outb = jax.block_until_ready(manager_conditioner(xb, mib, manager_conditioning="max"))
    refb = jnp.concatenate(
        [mib, jnp.broadcast_to(jnp.max(xb, axis=1, keepdims=True), (B, M, D))], axis=-1)
    ok &= bool(jnp.array_equal(outb, refb))

    # 6) 'cat' and identity paths (no Pallas needed).
    x_cat = jax.random.normal(k5, (B, M, D), dtype=jnp.float32)
    out_cat = jax.block_until_ready(
        manager_conditioner(x_cat, mi, manager_conditioning="cat"))
    ok &= bool(jnp.allclose(out_cat, _reference(x_cat, mi, "cat")))
    out_none = jax.block_until_ready(
        manager_conditioner(x, mi, manager_conditioning="none"))
    ok &= bool(jnp.allclose(out_none, mi))

    print("KERNEL_OK" if ok else "KERNEL_MISMATCH")
</pallas_src>

<mosaic_0001>
module attributes {stable_mosaic.version = 11 : i64} {
  func.func @kernel(%arg0: i32, %arg1: i32, %arg2: memref<2x8x128xf32, #tpu.memory_space<vmem>>, %arg3: memref<2x32x128xf32, #tpu.memory_space<vmem>>, %arg4: memref<2x8x256xf32, #tpu.memory_space<vmem>>, %arg5: memref<2x8x128xf32, #tpu.memory_space<vmem>>) attributes {dimension_semantics = [#tpu.dimension_semantics<parallel>, #tpu.dimension_semantics<arbitrary>], iteration_bounds = array<i64: 1, 1>, scalar_prefetch = 0 : i64, scratch_operands = 1 : i64, tpu.core_type = #tpu.core_type<tc>, window_params = [{transform_indices = @transform_0, window_bounds = array<i64: 2, 8, 128>}, {transform_indices = @transform_1, window_bounds = array<i64: 2, 32, 128>}, {transform_indices = @transform_2, window_bounds = array<i64: 2, 8, 256>}]} {
    %c0 = arith.constant 0 : index
    %c0_0 = arith.constant 0 : index
    %c0_1 = arith.constant 0 : index
    %0 = vector.load %arg3[%c0, %c0_0, %c0_1] : memref<2x32x128xf32, #tpu.memory_space<vmem>>, vector<2x32x128xf32>
    %1 = vector.shape_cast %0 : vector<2x32x128xf32> to vector<2x4x8x128xf32>
    %cst = arith.constant dense<0xFF800000> : vector<2x8x128xf32>
    %2 = vector.multi_reduction <maximumf>, %1, %cst [1] : vector<2x4x8x128xf32> to vector<2x8x128xf32>
    %c0_i32 = arith.constant 0 : i32
    %3 = arith.cmpi eq, %arg1, %c0_i32 : i32
    %4 = arith.extui %3 : i1 to i32
    %c0_i32_2 = arith.constant 0 : i32
    %5 = arith.cmpi ne, %4, %c0_i32_2 : i32
    scf.if %5 {
      %c0_7 = arith.constant 0 : index
      %c0_8 = arith.constant 0 : index
      %c0_9 = arith.constant 0 : index
      %12 = vector.load %arg5[%c0_7, %c0_8, %c0_9] : memref<2x8x128xf32, #tpu.memory_space<vmem>>, vector<2x8x128xf32>
      tpu.vector_store %arg5[%c0_7, %c0_8, %c0_9], %2 {strides = array<i32>} : memref<2x8x128xf32, #tpu.memory_space<vmem>>, vector<2x8x128xf32>,
    } else {
    }
    %c0_i32_3 = arith.constant 0 : i32
    %6 = arith.cmpi sgt, %arg1, %c0_i32_3 : i32
    %7 = arith.extui %6 : i1 to i32
    %c0_i32_4 = arith.constant 0 : i32
    %8 = arith.cmpi ne, %7, %c0_i32_4 : i32
    scf.if %8 {
      %c0_7 = arith.constant 0 : index
      %c0_8 = arith.constant 0 : index
      %c0_9 = arith.constant 0 : index
      %12 = vector.load %arg5[%c0_7, %c0_8, %c0_9] : memref<2x8x128xf32, #tpu.memory_space<vmem>>, vector<2x8x128xf32>
      %13 = arith.maximumf %12, %2 : vector<2x8x128xf32>
      %c0_10 = arith.constant 0 : index
      %c0_11 = arith.constant 0 : index
      %c0_12 = arith.constant 0 : index
      %14 = vector.load %arg5[%c0_10, %c0_11, %c0_12] : memref<2x8x128xf32, #tpu.memory_space<vmem>>, vector<2x8x128xf32>
      tpu.vector_store %arg5[%c0_10, %c0_11, %c0_12], %13 {strides = array<i32>} : memref<2x8x128xf32, #tpu.memory_space<vmem>>, vector<2x8x128xf32>,
    } else {
    }
    %c0_i32_5 = arith.constant 0 : i32
    %9 = arith.cmpi eq, %arg1, %c0_i32_5 : i32
    %10 = arith.extui %9 : i1 to i32
    %c0_i32_6 = arith.constant 0 : i32
    %11 = arith.cmpi ne, %10, %c0_i32_6 : i32
    scf.if %11 {
      %c0_7 = arith.constant 0 : index
      %c0_8 = arith.constant 0 : index
      %c0_9 = arith.constant 0 : index
      %12 = vector.load %arg5[%c0_7, %c0_8, %c0_9] : memref<2x8x128xf32, #tpu.memory_space<vmem>>, vector<2x8x128xf32>
      %cst_10 = arith.constant dense<0xFF800000> : vector<2x128xf32>
      %13 = vector.multi_reduction <maximumf>, %12, %cst_10 [1] : vector<2x8x128xf32> to vector<2x128xf32>
      %14 = vector.shape_cast %13 : vector<2x128xf32> to vector<2x1x128xf32>
      %c0_11 = arith.constant 0 : index
      %c0_12 = arith.constant 0 : index
      %c0_13 = arith.constant 0 : index
      %15 = vector.load %arg2[%c0_11, %c0_12, %c0_13] : memref<2x8x128xf32, #tpu.memory_space<vmem>>, vector<2x8x128xf32>
      %c0_14 = arith.constant 0 : index
      %c0_15 = arith.constant 0 : index
      %c0_16 = arith.constant 0 : index
      %16 = vector.load %arg4[%c0_14, %c0_15, %c0_16] : memref<2x8x256xf32, #tpu.memory_space<vmem>>, vector<2x8x128xf32>
      tpu.vector_store %arg4[%c0_14, %c0_15, %c0_16], %15 {strides = array<i32>} : memref<2x8x256xf32, #tpu.memory_space<vmem>>, vector<2x8x128xf32>,
      %17 = vector.shape_cast %14 : vector<2x1x128xf32> to vector<2x1x128xf32>
      %18 = vector.broadcast %17 : vector<2x1x128xf32> to vector<2x8x128xf32>
      %c0_17 = arith.constant 0 : index
      %c0_18 = arith.constant 0 : index
      %c128 = arith.constant 128 : index
      %19 = vector.load %arg4[%c0_17, %c0_18, %c128] : memref<2x8x256xf32, #tpu.memory_space<vmem>>, vector<2x8x128xf32>
      tpu.vector_store %arg4[%c0_17, %c0_18, %c128], %18 {strides = array<i32>} : memref<2x8x256xf32, #tpu.memory_space<vmem>>, vector<2x8x128xf32>,
    } else {
    }
    return
  }
  func.func @transform_0(%arg0: i32, %arg1: i32) -> (i32, i32, i32) {
    %c0_i32 = arith.constant 0 : i32
    %c0_i32_0 = arith.constant 0 : i32
    %c0_i32_1 = arith.constant 0 : i32
    return %arg0, %c0_i32, %c0_i32_0 : i32, i32, i32
  }
  func.func @transform_1(%arg0: i32, %arg1: i32) -> (i32, i32, i32) {
    %c0_i32 = arith.constant 0 : i32
    %c0_i32_0 = arith.constant 0 : i32
    return %arg0, %arg1, %c0_i32 : i32, i32, i32
  }
  func.func @transform_2(%arg0: i32, %arg1: i32) -> (i32, i32, i32) {
    %c0_i32 = arith.constant 0 : i32
    %c0_i32_0 = arith.constant 0 : i32
    %c0_i32_1 = arith.constant 0 : i32
    return %arg0, %c0_i32, %c0_i32_0 : i32, i32, i32
  }
}

</mosaic_0001>

<llo_original>
// kernel: manager_conditioner.1
$region0: #{manager_conditioner.1}
  #allocation0 [shape = 'u32[]', space=smem, size = 0x4, offset = 0x4, fixed_abs, tag = 'smem constant byte address 0x4 - core index']
  #allocation1 [shape = 'u32[144,128]{1,0:T(1,128)}', space=vmem, size = 0x12000, scoped, tag = 'internal scratch']
  #allocation2 [shape = 'f32[2,8,128]{2,1,0:T(8,128)}', space=vmem, size = 0x2000, scoped, tag = 'scratch operand']
  %s0 = inlined_call_operand.hbm [shape: f32[2,8,128], index: 0, kind: input, shape index: {}]
  %s1 = inlined_call_operand.hbm [shape: f32[2,32,128], index: 1, kind: input, shape index: {}]
  %s2 = inlined_call_operand.hbm [shape: f32[2,8,256], index: 2, kind: output, shape index: {}]
  %s3 = sld [smem:[#allocation0]]
  $region38: #{manager_conditioner.1} parent=0
    _
  %s5 = ssub.s32 1, %s3
  %s6 = scalar_select 0, %s5, %s3
  $region1: #{manager_conditioner.1} parent=0
    #allocation3 [shape = 'u8[8192]{0}', space=vmem, size = 0x2000, scoped, tag = 'input window, operand 0, single buffered']
    #allocation4 [shape = 's32[1]{0}', space=sflag, size = 0x4, scoped, tag = 'scoped memory for manager_conditioner.1']
    #allocation5 [shape = 's32[1]{0}', space=sflag, size = 0x4, scoped, tag = 'scoped memory for manager_conditioner.1']
    #allocation6 [shape = 'u8[32768]{0}', space=vmem, size = 0x8000, scoped, tag = 'input window, operand 1, single buffered']
    #allocation7 [shape = 's32[1]{0}', space=sflag, size = 0x4, scoped, tag = 'scoped memory for manager_conditioner.1']
    #allocation8 [shape = 'u8[16384]{0}', space=vmem, size = 0x4000, scoped, tag = 'output window, operand 0, single buffered']
    %7 = vsyncpa [#allocation4], 0
    %8 = vsyncpa [#allocation7], 0
    %9 = vsyncpa [#allocation5], 0
    // Predicated region
    $region2: #{manager_conditioner.1} parent=1 // pred_check
      _
    $region3: #{manager_conditioner.1} parent=1 // pred_check_branch
      %11 = sbr.rel (0) target = $region5
    $region4: #{manager_conditioner.1} parent=1 // pred_region
      %s13 = ssub.s32 256, 256
      %14 = vsyncadd [#allocation4], %s13
      %s15 = sshll.u32 [#allocation3], 4
      %s16 = int_to_ptr.vmem [resolvable:$true] %s15
      %21 = dma.hbm_to_vmem [thread:$0]  %s0, 256, %s16, [#allocation4], 128, 128, 8
    $region5: #{manager_conditioner.1} parent=1 // pred_fallthru
      _
    // Predicated region
    $region6: #{manager_conditioner.1} parent=1 // pred_check
      _
    $region7: #{manager_conditioner.1} parent=1 // pred_check_branch
      %23 = sbr.rel (0) target = $region9
    $region8: #{manager_conditioner.1} parent=1 // pred_region
      %s25 = ssub.s32 1024, 1024
      %26 = vsyncadd [#allocation7], %s25
      %s27 = sshll.u32 [#allocation6], 4
      %s28 = int_to_ptr.vmem [resolvable:$true] %s27
      %33 = dma.hbm_to_vmem [thread:$0]  %s1, 1024, %s28, [#allocation7], 128, 128, 8
    $region9: #{manager_conditioner.1} parent=1 // pred_fallthru
      _
    // Predicated region
    $region10: #{manager_conditioner.1} parent=1 // pred_check
      _
    $region11: #{manager_conditioner.1} parent=1 // pred_check_branch
      %35 = sbr.rel (0) target = $region13
    $region12: #{manager_conditioner.1} parent=1 // pred_region
      %36 = dma.done [#allocation4], 256
    $region13: #{manager_conditioner.1} parent=1 // pred_fallthru
      _
    // Predicated region
    $region14: #{manager_conditioner.1} parent=1 // pred_check
      _
    $region15: #{manager_conditioner.1} parent=1 // pred_check_branch
      %38 = sbr.rel (0) target = $region17
    $region16: #{manager_conditioner.1} parent=1 // pred_region
      %39 = dma.done [#allocation7], 1024
    $region17: #{manager_conditioner.1} parent=1 // pred_fallthru
      _
    %v40 = vld [vmem:[#allocation6] sm:$0xff]
    %v41 = vld [vmem:[#allocation6 + $0x8] sm:$0xff]
    %v42 = vld [vmem:[#allocation6 + $0x10] sm:$0xff]
    %v43 = vld [vmem:[#allocation6 + $0x18] sm:$0xff]
    %v44 = vld [vmem:[#allocation6 + $0x20] sm:$0xff]
    %v45 = vld [vmem:[#allocation6 + $0x28] sm:$0xff]
    %v46 = vld [vmem:[#allocation6 + $0x30] sm:$0xff]
    %v47 = vld [vmem:[#allocation6 + $0x38] sm:$0xff]
    %v48 = vmax.f32 %v40, %v42
    %v49 = vmax.f32 %v41, %v43
    %v50 = vmax.f32 %v48, %v49
    %v51 = vmax.f32 %v44, %v46
    %v52 = vmax.f32 %v45, %v47
    %v53 = vmax.f32 %v51, %v52
    %p54 = scmp.eq.s32.totalorder 0, 0
    // Predicated region
    $region18: #{manager_conditioner.1} parent=1 // pred_check
      %p55 = pneg %p54
    $region19: #{manager_conditioner.1} parent=1 // pred_check_branch
      %57 = sbr.rel (%p55) target = $region21
    $region20: #{manager_conditioner.1} parent=1 // pred_region
      %58 = vst [vmem:[#allocation2] sm:$0xff] %v50
      %59 = vst [vmem:[#allocation2 + $0x8] sm:$0xff] %v53
    $region21: #{manager_conditioner.1} parent=1 // pred_fallthru
      _
    %p60 = scmp.gt.s32.totalorder 0, 0
    // Predicated region
    $region22: #{manager_conditioner.1} parent=1 // pred_check
      %p61 = pneg %p60
    $region23: #{manager_conditioner.1} parent=1 // pred_check_branch
      %63 = sbr.rel (%p61) target = $region25
    $region24: #{manager_conditioner.1} parent=1 // pred_region
      %v64 = vld [vmem:[#allocation2] sm:$0xff]
      %v65 = vld [vmem:[#allocation2 + $0x8] sm:$0xff]
      %v66 = vmax.f32 %v64, %v50
      %v67 = vmax.f32 %v65, %v53
      %68 = vst [vmem:[#allocation2] sm:$0xff] %v66
      %69 = vst [vmem:[#allocation2 + $0x8] sm:$0xff] %v67
    $region25: #{manager_conditioner.1} parent=1 // pred_fallthru
      _
    // Predicated region
    $region26: #{manager_conditioner.1} parent=1 // pred_check
      %p70 = pneg %p54
    $region27: #{manager_conditioner.1} parent=1 // pred_check_branch
      %72 = sbr.rel (%p70) target = $region29
    $region28: #{manager_conditioner.1} parent=1 // pred_region
      %v73 = vld [vmem:[#allocation2] sm:$0xff]
      %v74 = vld [vmem:[#allocation2 + $0x8] sm:$0xff]
      %v75 = vrot.slane %v73, 4
      %v76 = vmax.f32 %v73, %v75
      %v77 = vrot.slane %v76, 2
      %v78 = vmax.f32 %v76, %v77
      %v79 = vrot.slane %v78, 1
      %v80 = vmax.f32 %v78, %v79
      %v81 = vrot.slane %v74, 4
      %v82 = vmax.f32 %v74, %v81
      %v83 = vrot.slane %v82, 2
      %v84 = vmax.f32 %v82, %v83
      %v85 = vrot.slane %v84, 1
      %v86 = vmax.f32 %v84, %v85
      %v87 = vld [vmem:[#allocation3] sm:$0xff]
      %v88 = vld [vmem:[#allocation3 + $0x8] sm:$0xff]
      %89 = vst [vmem:[#allocation8] sm:$0xff] %v87
      %90 = vst [vmem:[#allocation8 + $0x10] sm:$0xff] %v88
      %91 = vst [vmem:[#allocation8 + $0x8] sm:$0xff] %v80
      %92 = vst [vmem:[#allocation8 + $0x18] sm:$0xff] %v86
    $region29: #{manager_conditioner.1} parent=1 // pred_fallthru
      _
    // Predicated region
    $region30: #{manager_conditioner.1} parent=1 // pred_check
      _
    $region31: #{manager_conditioner.1} parent=1 // pred_check_branch
      %94 = sbr.rel (0) target = $region33
    $region32: #{manager_conditioner.1} parent=1 // pred_region
      %s96 = ssub.s32 512, 512
      %97 = vsyncadd [#allocation5], %s96
      %s98 = sshll.u32 [#allocation8], 4
      %s99 = int_to_ptr.vmem [resolvable:$true] %s98
      %104 = dma.vmem_to_hbm [thread:$0]  %s99, 512, %s2, [#allocation5], 256, 256, 16
    $region33: #{manager_conditioner.1} parent=1 // pred_fallthru
      _
    // Predicated region
    $region34: #{manager_conditioner.1} parent=1 // pred_check
      _
    $region35: #{manager_conditioner.1} parent=1 // pred_check_branch
      %106 = sbr.rel (0) target = $region37
    $region36: #{manager_conditioner.1} parent=1 // pred_region
      %107 = dma.done [#allocation5], 512
    $region37: #{manager_conditioner.1} parent=1 // pred_fallthru
      _
    %108 = vsyncpa [#allocation4], 1
    %109 = vsyncpa [#allocation7], 1
    %110 = vsyncpa [#allocation5], 1

</llo_original>
